<compile_context>
chip_gen: v5e
topology: v5e:2x2
jax: 0.10.0
libtpu: 0.0.40
codegen_flags: <defaults>
</compile_context>

<pallas_src>
import jax
import jax.numpy as jnp
from jax import lax
from jax.experimental import pallas as pl
from jax.experimental.pallas import tpu as pltpu


def _round_up(x, m):
    return (x + m - 1) // m * m


def _pick_tile(dim, align, max_tile):
    """Tile size (multiple of `align`) <= max_tile that keeps padding waste small."""
    if dim <= max_tile:
        return _round_up(dim, align)
    for cand in (max_tile, max_tile // 2, max_tile // 4):
        if cand >= align and _round_up(dim, cand) - dim <= dim // 8:
            return cand
    return max(max_tile // 4, align)


def _linear_kernel_single_k(x_ref, w_ref, o_ref):
    # Single K block: one MXU dot straight to the output tile (no accumulator,
    # no pl.when phases).  weight stays in native (out_dim, in_dim) layout, so
    # we contract dim 1 of x with dim 1 of w (i.e. x @ w.T).
    o_ref[...] = lax.dot_general(
        x_ref[...], w_ref[...],
        dimension_numbers=(((1,), (1,)), ((), ())),
        preferred_element_type=jnp.float32,
    ).astype(o_ref.dtype)


def _linear_kernel_multi_k(x_ref, w_ref, o_ref, acc_ref):
    # K is a sequential reduction grid axis (axis 2); accumulate in f32 VMEM.
    @pl.when(pl.program_id(2) == 0)
    def _():
        acc_ref[...] = jnp.zeros_like(acc_ref)

    acc_ref[...] += lax.dot_general(
        x_ref[...], w_ref[...],
        dimension_numbers=(((1,), (1,)), ((), ())),
        preferred_element_type=jnp.float32,
    )

    @pl.when(pl.program_id(2) == pl.num_programs(2) - 1)
    def _():
        o_ref[...] = acc_ref[...].astype(o_ref.dtype)


def classifier_forward(x, weight):
    """Classifier.forward: y = x @ weight.T (nn.Linear, bias=False).

    x: (..., in_dim); weight: (out_dim, in_dim) (PyTorch layout — used as-is,
    never transposed or up-cast in HBM).
    """
    lead = x.shape[:-1]
    K = x.shape[-1]
    N, Kw = weight.shape
    assert Kw == K, (Kw, K)

    # Compute in the operands' native (promoted) precision: bf16 stays bf16 on
    # the MXU, f32 stays f32.  Accumulation is f32 inside the kernel.
    compute_dtype = jnp.promote_types(x.dtype, weight.dtype)
    out_dtype = x.dtype

    x2 = x.reshape(-1, K)
    if x2.dtype != compute_dtype:
        x2 = x2.astype(compute_dtype)
    w = weight if weight.dtype == compute_dtype else weight.astype(compute_dtype)
    M = x2.shape[0]

    in_isz = jnp.dtype(compute_dtype).itemsize
    out_isz = jnp.dtype(out_dtype).itemsize

    # ---- tile plan ---------------------------------------------------------
    tm = _pick_tile(M, 8, 512)        # sublane axis: multiple of 8, tight padding
    tn = _pick_tile(N, 128, 512)      # lane axis: multiple of 128 -> unmasked vst

    Kp128 = _round_up(K, 128)
    # Prefer a single pass over K (no accumulator, no K grid axis) when the
    # double-buffered tiles fit a conservative VMEM budget (safe on v7x, 64 MiB/TC).
    single_k_budget = 24 * 1024 * 1024
    single_k_bytes = (2 * (tm * Kp128 + tn * Kp128) * in_isz
                      + 2 * tm * tn * out_isz)
    if single_k_bytes <= single_k_budget:
        tk = Kp128
    else:
        tk = 1024 if in_isz <= 2 else 512

    Mp = _round_up(M, tm)
    Np = _round_up(N, tn)
    Kp = _round_up(K, tk)
    n_k = Kp // tk

    # Pad only when actually misaligned (zero K-padding contributes nothing).
    xp = x2 if (Mp == M and Kp == K) else jnp.pad(x2, ((0, Mp - M), (0, Kp - K)))
    wp = w if (Np == N and Kp == K) else jnp.pad(w, ((0, Np - N), (0, Kp - K)))

    # VMEM limit from actual tile bytes (double-buffered) plus headroom, capped
    # well below v7x's 64 MiB per-TensorCore physical VMEM.
    x_blk = tm * tk * in_isz
    w_blk = tn * tk * in_isz
    o_blk = tm * tn * out_isz
    acc_blk = tm * tn * 4 if n_k > 1 else 0
    vmem_limit = int(min(max(2 * (2 * (x_blk + w_blk + o_blk) + acc_blk),
                             16 * 1024 * 1024),
                         48 * 1024 * 1024))

    cost = pl.CostEstimate(
        flops=2 * Mp * Np * Kp,
        transcendentals=0,
        # account for operand re-streaming across the output grid
        bytes_accessed=in_isz * (Mp * Kp * (Np // tn) + Np * Kp * (Mp // tm))
        + out_isz * Mp * Np,
    )

    if n_k == 1:
        grid = (Mp // tm, Np // tn)
        grid_spec = pltpu.PrefetchScalarGridSpec(
            num_scalar_prefetch=0,
            grid=grid,
            in_specs=[
                pl.BlockSpec((tm, tk), lambda i, j: (i, 0)),   # x: resident across j
                pl.BlockSpec((tn, tk), lambda i, j: (j, 0)),   # weight: native layout
            ],
            out_specs=pl.BlockSpec((tm, tn), lambda i, j: (i, j)),
        )
        kernel = _linear_kernel_single_k
        dim_sem = ("parallel", "parallel")
    else:
        grid = (Mp // tm, Np // tn, n_k)
        grid_spec = pltpu.PrefetchScalarGridSpec(
            num_scalar_prefetch=0,
            grid=grid,
            in_specs=[
                pl.BlockSpec((tm, tk), lambda i, j, k: (i, k)),
                pl.BlockSpec((tn, tk), lambda i, j, k: (j, k)),
            ],
            out_specs=pl.BlockSpec((tm, tn), lambda i, j, k: (i, j)),
            scratch_shapes=[pltpu.VMEM((tm, tn), jnp.float32)],
        )
        kernel = _linear_kernel_multi_k
        dim_sem = ("parallel", "parallel", "arbitrary")

    out = pl.pallas_call(
        kernel,
        out_shape=jax.ShapeDtypeStruct((Mp, Np), out_dtype),
        grid_spec=grid_spec,
        compiler_params=pltpu.CompilerParams(
            dimension_semantics=dim_sem,
            vmem_limit_bytes=vmem_limit,
        ),
        cost_estimate=cost,
    )(xp, wp)

    if Mp != M or Np != N:
        out = out[:M, :N]
    return out.reshape(*lead, N)


if __name__ == "__main__":
    key = jax.random.PRNGKey(0)
    kx, kw = jax.random.split(key)

    # Small shapes consistent with the module: (batch=2, seq=8, hidden=32) -> out_dim=16.
    batch, seq, in_dim, out_dim = 2, 8, 32, 16
    x = jax.random.normal(kx, (batch, seq, in_dim), jnp.float32)
    w = 0.1 * jax.random.normal(kw, (out_dim, in_dim), jnp.float32)  # nn.Linear weight

    # f32 path (matches PyTorch f32 Linear).
    out = jax.block_until_ready(classifier_forward(x, w))
    ref = jax.block_until_ready(jnp.einsum("bsk,nk->bsn", x, w))
    assert out.shape == (batch, seq, out_dim), out.shape
    assert out.dtype == x.dtype, out.dtype
    assert jnp.allclose(out, ref, atol=1e-5, rtol=1e-5), \
        f"max err {jnp.max(jnp.abs(out - ref))}"

    # bf16 fast path (native MXU dtype, f32 accumulation inside the kernel).
    out_bf16 = jax.block_until_ready(
        classifier_forward(x.astype(jnp.bfloat16), w.astype(jnp.bfloat16)))
    assert out_bf16.dtype == jnp.bfloat16, out_bf16.dtype
    assert jnp.allclose(out_bf16.astype(jnp.float32), ref, atol=8e-2, rtol=8e-2), \
        f"max err {jnp.max(jnp.abs(out_bf16.astype(jnp.float32) - ref))}"

    print("KERNEL_OK")
</pallas_src>

<mosaic_0001>
module attributes {stable_mosaic.version = 11 : i64} {
  func.func @_linear_kernel_single_k(%arg0: i32, %arg1: i32, %arg2: memref<16x128xf32, #tpu.memory_space<vmem>>, %arg3: memref<128x128xf32, #tpu.memory_space<vmem>>, %arg4: memref<16x128xf32, #tpu.memory_space<vmem>>) attributes {dimension_semantics = [#tpu.dimension_semantics<parallel>, #tpu.dimension_semantics<parallel>], iteration_bounds = array<i64: 1, 1>, scalar_prefetch = 0 : i64, scratch_operands = 0 : i64, tpu.core_type = #tpu.core_type<tc>, window_params = [{transform_indices = @transform_0, window_bounds = array<i64: 16, 128>}, {transform_indices = @transform_1, window_bounds = array<i64: 128, 128>}, {transform_indices = @transform_2, window_bounds = array<i64: 16, 128>}]} {
    %c0 = arith.constant 0 : index
    %c0_0 = arith.constant 0 : index
    %0 = vector.load %arg2[%c0, %c0_0] : memref<16x128xf32, #tpu.memory_space<vmem>>, vector<16x128xf32>
    %c0_1 = arith.constant 0 : index
    %c0_2 = arith.constant 0 : index
    %1 = vector.load %arg3[%c0_1, %c0_2] : memref<128x128xf32, #tpu.memory_space<vmem>>, vector<128x128xf32>
    %cst = arith.constant dense<0.000000e+00> : vector<16x128xf32>
    %2 = tpu.matmul %0, %1, %cst {dimension_numbers = #tpu.dot_dimension_numbers<[1], [1], [0], [0], [0, 0, 1, 0], [], []>} : vector<16x128xf32>, vector<128x128xf32>, vector<16x128xf32> -> vector<16x128xf32>
    %c0_3 = arith.constant 0 : index
    %c0_4 = arith.constant 0 : index
    %3 = vector.load %arg4[%c0_3, %c0_4] : memref<16x128xf32, #tpu.memory_space<vmem>>, vector<16x128xf32>
    tpu.vector_store %arg4[%c0_3, %c0_4], %2 {strides = array<i32>} : memref<16x128xf32, #tpu.memory_space<vmem>>, vector<16x128xf32>,
    return
  }
  func.func @transform_0(%arg0: i32, %arg1: i32) -> (i32, i32) {
    %c0_i32 = arith.constant 0 : i32
    %c0_i32_0 = arith.constant 0 : i32
    return %arg0, %c0_i32 : i32, i32
  }
  func.func @transform_1(%arg0: i32, %arg1: i32) -> (i32, i32) {
    %c0_i32 = arith.constant 0 : i32
    %c0_i32_0 = arith.constant 0 : i32
    return %arg1, %c0_i32 : i32, i32
  }
  func.func @transform_2(%arg0: i32, %arg1: i32) -> (i32, i32) {
    %c0_i32 = arith.constant 0 : i32
    return %arg0, %arg1 : i32, i32
  }
}

</mosaic_0001>

<llo_original>
// kernel: tpu_custom_call.1
$region0: #{tpu_custom_call.1}
  #allocation0 [shape = 'u32[]', space=smem, size = 0x4, offset = 0x4, fixed_abs, tag = 'smem constant byte address 0x4 - core index']
  #allocation1 [shape = 'u32[72,128]{1,0:T(1,128)}', space=vmem, size = 0x9000, scoped, tag = 'internal scratch']
  %s0 = inlined_call_operand.hbm [shape: f32[16,128], index: 0, kind: input, shape index: {}]
  %s1 = inlined_call_operand.hbm [shape: f32[128,128], index: 1, kind: input, shape index: {}]
  %s2 = inlined_call_operand.hbm [shape: f32[16,128], index: 2, kind: output, shape index: {}]
  %s3 = sld [smem:[#allocation0]]
  $region26: #{tpu_custom_call.1} parent=0
    _
  %s5 = ssub.s32 1, %s3
  %s6 = scalar_select 0, %s5, %s3
  $region1: #{tpu_custom_call.1} parent=0
    #allocation2 [shape = 'u8[8192]{0}', space=vmem, size = 0x2000, scoped, tag = 'input window, operand 0, single buffered']
    #allocation3 [shape = 's32[1]{0}', space=sflag, size = 0x4, scoped, tag = 'scoped memory for tpu_custom_call.1']
    #allocation4 [shape = 's32[1]{0}', space=sflag, size = 0x4, scoped, tag = 'scoped memory for tpu_custom_call.1']
    #allocation5 [shape = 'u8[65536]{0}', space=vmem, size = 0x10000, scoped, tag = 'input window, operand 1, single buffered']
    #allocation6 [shape = 's32[1]{0}', space=sflag, size = 0x4, scoped, tag = 'scoped memory for tpu_custom_call.1']
    #allocation7 [shape = 'u8[8192]{0}', space=vmem, size = 0x2000, scoped, tag = 'output window, operand 0, single buffered']
    %7 = vsyncpa [#allocation3], 0
    %8 = vsyncpa [#allocation6], 0
    %9 = vsyncpa [#allocation4], 0
    // Predicated region
    $region2: #{tpu_custom_call.1} parent=1 // pred_check
      _
    $region3: #{tpu_custom_call.1} parent=1 // pred_check_branch
      %11 = sbr.rel (0) target = $region5
    $region4: #{tpu_custom_call.1} parent=1 // pred_region
      %13 = vsyncadd [#allocation3], 0
      %s14 = sshll.u32 %s0, 4
      %s15 = int_to_ptr.hbm [resolvable:$true] %s14
      %s16 = sshll.u32 [#allocation2], 4
      %s17 = int_to_ptr.vmem [resolvable:$true] %s16
      %22 = dma.hbm_to_vmem [thread:$0]  %s15, 256, %s17, [#allocation3], 128, 128, 8
    $region5: #{tpu_custom_call.1} parent=1 // pred_fallthru
      _
    // Predicated region
    $region6: #{tpu_custom_call.1} parent=1 // pred_check
      _
    $region7: #{tpu_custom_call.1} parent=1 // pred_check_branch
      %24 = sbr.rel (0) target = $region9
    $region8: #{tpu_custom_call.1} parent=1 // pred_region
      %26 = vsyncadd [#allocation6], 0
      %s27 = sshll.u32 %s1, 4
      %s28 = int_to_ptr.hbm [resolvable:$true] %s27
      %s29 = sshll.u32 [#allocation5], 4
      %s30 = int_to_ptr.vmem [resolvable:$true] %s29
      %35 = dma.hbm_to_vmem [thread:$0]  %s28, 2048, %s30, [#allocation6], 128, 128, 8
    $region9: #{tpu_custom_call.1} parent=1 // pred_fallthru
      _
    // Predicated region
    $region10: #{tpu_custom_call.1} parent=1 // pred_check
      _
    $region11: #{tpu_custom_call.1} parent=1 // pred_check_branch
      %37 = sbr.rel (0) target = $region13
    $region12: #{tpu_custom_call.1} parent=1 // pred_region
      %39 = dma.done [#allocation3], 256
    $region13: #{tpu_custom_call.1} parent=1 // pred_fallthru
      _
    // Predicated region
    $region14: #{tpu_custom_call.1} parent=1 // pred_check
      _
    $region15: #{tpu_custom_call.1} parent=1 // pred_check_branch
      %41 = sbr.rel (0) target = $region17
    $region16: #{tpu_custom_call.1} parent=1 // pred_region
      %43 = dma.done [#allocation6], 2048
    $region17: #{tpu_custom_call.1} parent=1 // pred_fallthru
      _
    %v44 = vld [vmem:[#allocation2] sm:$0xff]
    %v45 = vld [vmem:[#allocation2 + $0x8] sm:$0xff]
    %v46 = vld [vmem:[#allocation5] sm:$0xff]
    %v47 = vld [vmem:[#allocation5 + $0x8] sm:$0xff]
    %v48 = vld [vmem:[#allocation5 + $0x10] sm:$0xff]
    %v49 = vld [vmem:[#allocation5 + $0x18] sm:$0xff]
    %v50 = vld [vmem:[#allocation5 + $0x20] sm:$0xff]
    %v51 = vld [vmem:[#allocation5 + $0x28] sm:$0xff]
    %v52 = vld [vmem:[#allocation5 + $0x30] sm:$0xff]
    %v53 = vld [vmem:[#allocation5 + $0x38] sm:$0xff]
    %v54 = vld [vmem:[#allocation5 + $0x40] sm:$0xff]
    %v55 = vld [vmem:[#allocation5 + $0x48] sm:$0xff]
    %v56 = vld [vmem:[#allocation5 + $0x50] sm:$0xff]
    %v57 = vld [vmem:[#allocation5 + $0x58] sm:$0xff]
    %v58 = vld [vmem:[#allocation5 + $0x60] sm:$0xff]
    %v59 = vld [vmem:[#allocation5 + $0x68] sm:$0xff]
    %v60 = vld [vmem:[#allocation5 + $0x70] sm:$0xff]
    %v61 = vld [vmem:[#allocation5 + $0x78] sm:$0xff]
    %62 = vmatpush.xpose.msra.mxu0 %v61
    %63 = vmatpush.xpose.msra.mxu0 %v60
    %64 = vmatpush.xpose.msra.mxu0 %v59
    %65 = vmatpush.xpose.msra.mxu0 %v58
    %66 = vmatpush.xpose.msra.mxu0 %v57
    %67 = vmatpush.xpose.msra.mxu0 %v56
    %68 = vmatpush.xpose.msra.mxu0 %v55
    %69 = vmatpush.xpose.msra.mxu0 %v54
    %70 = vmatpush.xpose.msra.mxu0 %v53
    %71 = vmatpush.xpose.msra.mxu0 %v52
    %72 = vmatpush.xpose.msra.mxu0 %v51
    %73 = vmatpush.xpose.msra.mxu0 %v50
    %74 = vmatpush.xpose.msra.mxu0 %v49
    %75 = vmatpush.xpose.msra.mxu0 %v48
    %76 = vmatpush.xpose.msra.mxu0 %v47
    %77 = vmatpush.xpose.msra.mxu0 %v46
    %78 = vmatmul.f32.gmra.mxu0 %v44
    %v79 = vpop.f32.mrf.mxu0
    %v80 = vadd.f32 0.0, %v79
    %81 = vmatmul.f32.gmra.mxu0 %v45
    %v82 = vpop.f32.mrf.mxu0
    %v83 = vadd.f32 0.0, %v82
    %84 = vdwg.mxu0
    %85 = vst [vmem:[#allocation7] sm:$0xff] %v80
    %86 = vst [vmem:[#allocation7 + $0x8] sm:$0xff] %v83
    // Predicated region
    $region18: #{tpu_custom_call.1} parent=1 // pred_check
      _
    $region19: #{tpu_custom_call.1} parent=1 // pred_check_branch
      %88 = sbr.rel (0) target = $region21
    $region20: #{tpu_custom_call.1} parent=1 // pred_region
      %90 = vsyncadd [#allocation4], 0
      %s91 = sshll.u32 [#allocation7], 4
      %s92 = int_to_ptr.vmem [resolvable:$true] %s91
      %s93 = sshll.u32 %s2, 4
      %s94 = int_to_ptr.hbm [resolvable:$true] %s93
      %99 = dma.vmem_to_hbm [thread:$0]  %s92, 256, %s94, [#allocation4], 128, 128, 8
    $region21: #{tpu_custom_call.1} parent=1 // pred_fallthru
      _
    // Predicated region
    $region22: #{tpu_custom_call.1} parent=1 // pred_check
      _
    $region23: #{tpu_custom_call.1} parent=1 // pred_check_branch
      %101 = sbr.rel (0) target = $region25
    $region24: #{tpu_custom_call.1} parent=1 // pred_region
      %103 = dma.done [#allocation4], 256
    $region25: #{tpu_custom_call.1} parent=1 // pred_fallthru
      _
    %104 = vsyncpa [#allocation3], 1
    %105 = vsyncpa [#allocation6], 1
    %106 = vsyncpa [#allocation4], 1

</llo_original>
